<compile_context>
chip_gen: v5e
topology: v5e:2x2
jax: 0.10.0
libtpu: 0.0.40
codegen_flags: <defaults>
</compile_context>

<pallas_src>
import math

import jax
import jax.numpy as jnp
from jax.experimental import pallas as pl
from jax.experimental.pallas import tpu as pltpu

_LANE = 128


def create_sinusoidal_embeddings(seq_len: int, dim: int) -> jnp.ndarray:
    """Deterministic parameter init, matching the PyTorch __init__ exactly."""
    position = jnp.arange(seq_len, dtype=jnp.float32)[:, None]            # (S, 1)
    div_term = jnp.exp(jnp.arange(0, dim, 2, dtype=jnp.float32)
                       * (-(math.log(10000.0) / dim)))                    # (D/2,)
    pe = jnp.zeros((seq_len, dim), dtype=jnp.float32)
    pe = pe.at[:, 0::2].set(jnp.sin(position * div_term))
    pe = pe.at[:, 1::2].set(jnp.cos(position * div_term))
    return pe


def _add_pe_kernel(x_ref, pe_ref, o_ref):
    # x_ref: (TB, TF) tile, pe_ref: (1, TF) row -> sublane-broadcast add on VPU.
    o_ref[...] = (x_ref[...] + pe_ref[...]).astype(o_ref.dtype)


def _ceil_to(a: int, m: int) -> int:
    return -(-a // m) * m


def _choose_block(batch: int, flat: int, itemsize: int,
                  target_tile_bytes: int = 6 << 20,
                  vmem_budget_bytes: int = 36 << 20,
                  min_split_bytes: int = 1 << 20):
    """Pick a lane-dense (TB, TF) block for a (batch, flat) array.

    Sizing uses sublane-PADDED bytes: a (TB, TF) tile occupies
    ceil(TB / smult) * smult sublanes of VMEM (smult = 8 for f32, 16 for bf16,
    32 for int8), and the (1, TF) PE row pads to smult sublanes.  Total VMEM
    with default double buffering is 2 * (x_in + out + pe) padded tiles, which
    is kept under `vmem_budget_bytes` (< the 48 MiB scoped limit we request).
    """
    smult = max(8, 32 // itemsize)                     # sublane multiple per dtype
    # Batch (sublane) tile: full axis for small batch, else 64 (multiple of smult).
    tb = batch if batch <= 64 else 64
    padded_tb = _ceil_to(max(tb, 1), smult)
    padded_pe_rows = smult                             # (1, TF) pads to (smult, TF)

    # Lane (flat) tile, bounded by padded-VMEM budget and the per-tile target.
    per_lane_bytes = 2 * itemsize * (2 * padded_tb + padded_pe_rows)
    tf_vmem = vmem_budget_bytes // per_lane_bytes
    tf_tgt = max(_LANE, target_tile_bytes // (padded_tb * itemsize))
    tf = max(_LANE, (min(tf_vmem, tf_tgt) // _LANE) * _LANE)   # multiple of 128
    if tf >= flat:
        tf = flat                                      # full axis is always legal

    # v7x: ensure >=2 grid steps for non-trivial tensors so both TensorCores
    # can stream (harmless no-op on 1-TC v5e/v6e and on tiny inputs).
    n_steps = (-(-batch // tb)) * (-(-flat // tf))
    if n_steps == 1 and batch * flat * itemsize > min_split_bytes and flat > _LANE:
        tf = max(_LANE, _ceil_to((flat + 1) // 2, _LANE))
    return tb, tf


def _sinusoidal_positional_encoding_impl(x: jnp.ndarray,
                                         pe_table: jnp.ndarray) -> jnp.ndarray:
    """Equivalent of SinusoidalPositionalEncoding.forward: x + pe[:x.shape[1]]."""
    B, S, D = x.shape
    F = S * D
    itemsize = jnp.dtype(x.dtype).itemsize

    # Lane-dense layout plumbing: kernel sees x as (B, S*D) and pe as (1, S*D).
    x2 = x.reshape(B, F)
    # Cast PE to x.dtype: fewer DMA bytes / smaller VMEM footprint for bf16,
    # and no per-vreg up-convert in the add.  (Semantic note: PyTorch's f32
    # buffer would promote a bf16 x to f32; we keep x.dtype for the output.)
    pe2 = pe_table[:S].astype(x.dtype).reshape(1, F)

    TB, TF = _choose_block(B, F, itemsize)
    n_f = pl.cdiv(F, TF)
    n_b = pl.cdiv(B, TB)
    grid = (n_f, n_b)          # PE-varying axis OUTER, batch axis INNER

    cost = pl.CostEstimate(
        flops=B * F,                                    # one add per element
        transcendentals=0,
        # x read + out write per element; PE read once per F-tile (it is
        # resident across the inner batch axis).
        bytes_accessed=(2 * B * F + F) * itemsize,
    )

    out2 = pl.pallas_call(
        _add_pe_kernel,
        out_shape=jax.ShapeDtypeStruct((B, F), x.dtype),
        grid_spec=pltpu.PrefetchScalarGridSpec(
            num_scalar_prefetch=0,
            grid=grid,
            in_specs=[
                # x tile: batch index varies with the inner axis.
                pl.BlockSpec((TB, TF), lambda f, b: (b, f)),
                # PE row: block index depends only on the OUTER axis -> kept
                # resident in VMEM across all inner (batch) steps, no re-DMA.
                pl.BlockSpec((1, TF), lambda f, b: (0, f)),
            ],
            out_specs=pl.BlockSpec((TB, TF), lambda f, b: (b, f)),
        ),
        compiler_params=pltpu.CompilerParams(
            # Both axes are independent -> shardable across v7x's 2 TCs.
            dimension_semantics=("parallel", "parallel"),
            # Lift the default scoped VMEM limit (16 MiB on v5e, 32 MiB on
            # v6e/v7x) so 6 MiB tiles fit; 48 MiB stays well under every
            # generation's physical VMEM (64 MiB on v7x, 128 MiB elsewhere).
            vmem_limit_bytes=48 << 20,
        ),
        input_output_aliases={0: 0},        # out = x + pe reuses x's HBM buffer
        cost_estimate=cost,
    )(x2, pe2)

    return out2.reshape(B, S, D)


# Donating x at the jit boundary makes the in-place alias real (no defensive
# copy).  Callers that still need x afterwards should wrap the impl in their
# own non-donating jax.jit.
sinusoidal_positional_encoding = jax.jit(_sinusoidal_positional_encoding_impl,
                                         donate_argnums=(0,))


if __name__ == "__main__":
    # Module config: seq_len=16, dim=32; input uses seq=8 (<= seq_len).
    seq_len, dim = 16, 32
    batch, seq = 2, 8

    pe_table = create_sinusoidal_embeddings(seq_len, dim)

    key = jax.random.PRNGKey(0)
    x = jax.random.normal(key, (batch, seq, dim), dtype=jnp.float32)

    # Reference check (plain JAX, mirrors the PyTorch forward).  Computed
    # BEFORE the kernel call because x is donated to the kernel.
    ref = x + pe_table[:seq]

    out = sinusoidal_positional_encoding(x, pe_table)
    jax.block_until_ready(out)

    assert out.shape == (batch, seq, dim)
    assert jnp.allclose(out, ref, atol=1e-6), "mismatch vs reference"

    print("KERNEL_OK")
</pallas_src>

<mosaic_0001>
module attributes {stable_mosaic.version = 11 : i64} {
  func.func @_add_pe_kernel(%arg0: i32, %arg1: i32, %arg2: memref<2x256xf32, #tpu.memory_space<vmem>>, %arg3: memref<1x256xf32, #tpu.memory_space<vmem>>, %arg4: memref<2x256xf32, #tpu.memory_space<vmem>>) attributes {dimension_semantics = [#tpu.dimension_semantics<parallel>, #tpu.dimension_semantics<parallel>], iteration_bounds = array<i64: 1, 1>, scalar_prefetch = 0 : i64, scratch_operands = 0 : i64, tpu.core_type = #tpu.core_type<tc>, window_params = [{transform_indices = @transform_0, window_bounds = array<i64: 2, 256>}, {transform_indices = @transform_1, window_bounds = array<i64: 1, 256>}, {transform_indices = @transform_2, window_bounds = array<i64: 2, 256>}]} {
    %c0 = arith.constant 0 : index
    %c0_0 = arith.constant 0 : index
    %0 = vector.load %arg2[%c0, %c0_0] : memref<2x256xf32, #tpu.memory_space<vmem>>, vector<2x256xf32>
    %c0_1 = arith.constant 0 : index
    %c0_2 = arith.constant 0 : index
    %1 = vector.load %arg3[%c0_1, %c0_2] : memref<1x256xf32, #tpu.memory_space<vmem>>, vector<1x256xf32>
    %2 = vector.broadcast %1 : vector<1x256xf32> to vector<2x256xf32>
    %3 = arith.addf %0, %2 : vector<2x256xf32>
    %c0_3 = arith.constant 0 : index
    %c0_4 = arith.constant 0 : index
    %4 = vector.load %arg4[%c0_3, %c0_4] : memref<2x256xf32, #tpu.memory_space<vmem>>, vector<2x256xf32>
    tpu.vector_store %arg4[%c0_3, %c0_4], %3 {strides = array<i32>} : memref<2x256xf32, #tpu.memory_space<vmem>>, vector<2x256xf32>,
    return
  }
  func.func @transform_0(%arg0: i32, %arg1: i32) -> (i32, i32) {
    %c0_i32 = arith.constant 0 : i32
    return %arg1, %arg0 : i32, i32
  }
  func.func @transform_1(%arg0: i32, %arg1: i32) -> (i32, i32) {
    %c0_i32 = arith.constant 0 : i32
    %c0_i32_0 = arith.constant 0 : i32
    return %c0_i32, %arg0 : i32, i32
  }
  func.func @transform_2(%arg0: i32, %arg1: i32) -> (i32, i32) {
    %c0_i32 = arith.constant 0 : i32
    return %arg1, %arg0 : i32, i32
  }
}

</mosaic_0001>

<llo_original>
// kernel: _sinusoidal_positional_encoding_impl.1
$region0: #{_sinusoidal_positional_encoding_impl.1}
  #allocation0 [shape = 'u32[]', space=smem, size = 0x4, offset = 0x4, fixed_abs, tag = 'smem constant byte address 0x4 - core index']
  #allocation1 [shape = 'u32[72,128]{1,0:T(1,128)}', space=vmem, size = 0x9000, scoped, tag = 'internal scratch']
  %s0 = inlined_call_operand.vmem [shape: f32[2,256], index: 0, kind: input, shape index: {}, may-alias: {0,2}]
  %s1 = inlined_call_operand.vmem [shape: f32[1,256], index: 1, kind: input, shape index: {}]
  %s2 = inlined_call_operand.vmem [shape: f32[2,256], index: 2, kind: output, shape index: {}, may-alias: {0,2}]
  %s3 = sld [smem:[#allocation0]]
  $region18: #{_sinusoidal_positional_encoding_impl.1} parent=0
    _
  %s5 = ssub.s32 1, %s3
  %s6 = scalar_select 0, %s5, %s3
  // Predicated region
  $region2: #{_sinusoidal_positional_encoding_impl.1} parent=0 // pred_check
    _
  $region3: #{_sinusoidal_positional_encoding_impl.1} parent=0 // pred_check_branch
    %8 = sbr.rel (0) target = $region5
  $region4: #{_sinusoidal_positional_encoding_impl.1} parent=0 // pred_region
    _
  $region5: #{_sinusoidal_positional_encoding_impl.1} parent=0 // pred_fallthru
    _
  // Predicated region
  $region6: #{_sinusoidal_positional_encoding_impl.1} parent=0 // pred_check
    _
  $region7: #{_sinusoidal_positional_encoding_impl.1} parent=0 // pred_check_branch
    %10 = sbr.rel (0) target = $region9
  $region8: #{_sinusoidal_positional_encoding_impl.1} parent=0 // pred_region
    _
  $region9: #{_sinusoidal_positional_encoding_impl.1} parent=0 // pred_fallthru
    _
  %v11 = vld [vmem:[%s0] sm:$0xf]
  %v12 = vld [vmem:[%s1] sm:$0x3]
  %v14 = vperm.slane %v12, 0
  %v15 = vperm.slane %v12, 1
  %v16 = vrot.slane %v15, 6
  %vm17 = vcmask 1041408
  %v18 = vsel %vm17, %v14, %v16
  %v20 = vadd.f32 %v11, %v18
  %21 = vst [vmem:[%s2] sm:$0xf] %v20
  // Predicated region
  $region10: #{_sinusoidal_positional_encoding_impl.1} parent=0 // pred_check
    _
  $region11: #{_sinusoidal_positional_encoding_impl.1} parent=0 // pred_check_branch
    %23 = sbr.rel (0) target = $region13
  $region12: #{_sinusoidal_positional_encoding_impl.1} parent=0 // pred_region
    _
  $region13: #{_sinusoidal_positional_encoding_impl.1} parent=0 // pred_fallthru
    _
  // Predicated region
  $region14: #{_sinusoidal_positional_encoding_impl.1} parent=0 // pred_check
    _
  $region15: #{_sinusoidal_positional_encoding_impl.1} parent=0 // pred_check_branch
    %25 = sbr.rel (0) target = $region17
  $region16: #{_sinusoidal_positional_encoding_impl.1} parent=0 // pred_region
    _
  $region17: #{_sinusoidal_positional_encoding_impl.1} parent=0 // pred_fallthru
    _

</llo_original>
